<compile_context>
chip_gen: v7x
topology: tpu7x:2x2x1
jax: 0.10.0
libtpu: 0.0.40
codegen_flags: <defaults>
</compile_context>

<pallas_src>
import numpy as np

import jax
import jax.numpy as jnp
from jax import lax
from jax.experimental import pallas as pl
from jax.experimental.pallas import tpu as pltpu

_TOL = 1e-5
_EPS = 1e-5
_MAX_ITERS = 10000
_CHECK_EVERY = 8  # Sinkhorn steps between convergence checks (must divide _MAX_ITERS)


def _inter_domain_loss_kernel(mean_src_ref, mean_trg_ref, graph_ref,
                              loss_ref, iters_ref):
    # ---- doubly-stochastic (Sinkhorn) normalization, g carried in registers ----
    g0 = graph_ref[...] + _EPS                                   # (N, N)
    csum0 = jnp.sum(g0, axis=0, keepdims=True)                   # (1, N)

    def cond(carry):
        _, _, err, it = carry
        return jnp.logical_and(err > _TOL, it < _MAX_ITERS)

    def body(carry):
        g, csum, _, it = carry
        # First pair: reuse the column sums carried from the previous block's
        # convergence check (saves one full (N,N) reduction per block).
        g = g * pl.reciprocal(csum, approx=True)
        g = g * pl.reciprocal(jnp.sum(g, axis=1, keepdims=True), approx=True)
        # Middle pairs: approx reciprocal runs on the EUP slot, off the serial
        # VALU/XLU chain of this latency-bound loop.
        for _ in range(_CHECK_EVERY - 2):
            g = g * pl.reciprocal(jnp.sum(g, axis=0, keepdims=True), approx=True)
            g = g * pl.reciprocal(jnp.sum(g, axis=1, keepdims=True), approx=True)
        # Last pair: exact division so row sums are ~1 to f32 rounding and the
        # column-sum convergence check can actually reach the 1e-5 tolerance
        # (approx-reciprocal error would otherwise set the error floor).
        g = g / jnp.sum(g, axis=0, keepdims=True)
        g = g / jnp.sum(g, axis=1, keepdims=True)
        # Convergence state of the new g; this same csum feeds the next block's
        # first column-normalize.  Row sums are ~1 by construction right after
        # the exact row normalization, so (as in the previous version) the dual
        # rsum/csum check of the PyTorch reference reduces to the csum check.
        csum_new = jnp.sum(g, axis=0, keepdims=True)
        err_new = jnp.max(jnp.abs(csum_new - 1.0))
        return g, csum_new, err_new, it + _CHECK_EVERY

    # err starts at 1.0 so at least one block runs (PyTorch starts rsum=csum=0).
    g_final, _, _, it_final = lax.while_loop(
        cond, body, (g0, csum0, jnp.float32(1.0), jnp.int32(0)))
    iters_ref[0, 0] = it_final
    # TODO(synk): the PyTorch code prints a console warning when max_iterations
    # is hit; there is no in-kernel print side effect, so the iteration count is
    # surfaced as an SMEM output and the warning is emitted by the host wrapper.

    # ---- pairwise Euclidean distances via the Gram expansion (MXU), built
    # ---- AFTER the hot loop so nothing extra is live across it ----
    mean_src = mean_src_ref[...]                                 # (N, D)
    mean_trg = mean_trg_ref[...]                                 # (N, D)
    contract = (((1,), (1,)), ((), ()))  # contract last dim of both operands
    # dist2[i, j] = ||t_i||^2 + ||s_j||^2 - 2 <t_i, s_j>
    cross = lax.dot_general(mean_trg, mean_src, contract,
                            preferred_element_type=jnp.float32)   # (N, N)
    t_sq = jnp.sum(mean_trg * mean_trg, axis=-1, keepdims=True)   # (N, 1)
    s_sq = jnp.sum(mean_src * mean_src, axis=-1, keepdims=True)   # (N, 1)
    # Rank-1 ones(N,1) x s_sq(N,1)^T on the MXU: broadcasts ||s_j||^2 along rows
    # without a cross-lane transpose and with only N^2 MACs.
    s_sq_rows = lax.dot_general(jnp.ones_like(t_sq), s_sq, contract,
                                preferred_element_type=jnp.float32)  # (N, N)
    dist2 = t_sq + s_sq_rows - 2.0 * cross
    # Clamp: the expansion can go slightly negative from rounding -> NaN in sqrt.
    dist = jnp.sqrt(jnp.maximum(dist2, 0.0))                      # (N, N)

    # ---- final loss: sum(distance_matrix * doubly_stochastic(graph)) ----
    loss_ref[0, 0] = jnp.sum(dist * g_final)


def inter_domain_loss_with_iters(source, target, graph,
                                 source_embed_w=None, target_embed_w=None):
    # source_embed_w / target_embed_w mirror the PyTorch signature but (as in the
    # original forward) are unused.
    del source_embed_w, target_embed_w

    # Batch means computed in the wrapper: avoids DMAing the full (B, N, D)
    # tensors into VMEM just to average them once.
    mean_src = jnp.mean(source.astype(jnp.float32), axis=0)  # (N, D)
    mean_trg = jnp.mean(target.astype(jnp.float32), axis=0)  # (N, D)
    graph = graph.astype(jnp.float32)
    n, d = mean_src.shape

    # Explicit VMEM budget: graph input + loop-carried g (+ compiler temporaries)
    # plus the two (N, D) means, with headroom; capped at v7x's 64 MiB per-core
    # physical VMEM (v6e/v5e have more, so the cap is always safe).
    vmem_bytes = 4 * (3 * n * n + 4 * n * d) + (2 << 20)
    vmem_bytes = int(min(max(vmem_bytes, 16 << 20), 64 << 20))

    loss, iters = pl.pallas_call(
        _inter_domain_loss_kernel,
        out_shape=(
            jax.ShapeDtypeStruct((1, 1), jnp.float32),  # loss
            jax.ShapeDtypeStruct((1, 1), jnp.int32),    # Sinkhorn iteration count
        ),
        in_specs=[
            pl.BlockSpec(memory_space=pltpu.MemorySpace.VMEM),
            pl.BlockSpec(memory_space=pltpu.MemorySpace.VMEM),
            pl.BlockSpec(memory_space=pltpu.MemorySpace.VMEM),
        ],
        out_specs=(
            pl.BlockSpec(memory_space=pltpu.MemorySpace.SMEM),
            pl.BlockSpec(memory_space=pltpu.MemorySpace.SMEM),
        ),
        compiler_params=pltpu.CompilerParams(vmem_limit_bytes=vmem_bytes),
    )(mean_src, mean_trg, graph)
    return loss[0, 0], iters[0, 0]


def inter_domain_loss(source, target, graph, source_embed_w=None, target_embed_w=None):
    loss, _ = inter_domain_loss_with_iters(source, target, graph,
                                           source_embed_w, target_embed_w)
    return loss


def _reference_numpy(source, target, graph):
    """Plain NumPy re-implementation of the PyTorch forward (for verification)."""
    source = np.asarray(source, np.float32)
    target = np.asarray(target, np.float32)
    g = np.asarray(graph, np.float32).copy()

    mean_src = source.mean(axis=0)
    mean_trg = target.mean(axis=0)
    n = g.shape[1]
    dist = np.zeros((n, n), np.float32)
    for i in range(n):
        for j in range(n):
            dist[i, j] = np.sqrt(np.sum((mean_trg[i] - mean_src[j]) ** 2))

    g = g + _EPS
    rsum = np.zeros(g.shape[0], np.float32)
    csum = np.zeros(g.shape[1], np.float32)
    it = 0
    while (np.any(np.abs(rsum - 1) > _TOL) or np.any(np.abs(csum - 1) > _TOL)) \
            and it < _MAX_ITERS:
        g = g / g.sum(axis=0, keepdims=True)
        g = g / g.sum(axis=1, keepdims=True)
        rsum = g.sum(axis=1)
        csum = g.sum(axis=0)
        it += 1
    return float(np.sum(dist * g))


if __name__ == "__main__":
    key = jax.random.PRNGKey(0)
    k1, k2, k3, k4, k5 = jax.random.split(key, 5)

    B, N, D = 2, 8, 32
    source = jax.random.normal(k1, (B, N, D), jnp.float32)
    target = jax.random.normal(k2, (B, N, D), jnp.float32)
    # strictly positive graph so the Sinkhorn iteration is well behaved
    graph = jax.random.uniform(k3, (N, N), jnp.float32, minval=0.1, maxval=1.0)
    source_embed_w = jax.random.uniform(k4, (N, D), jnp.float32)
    target_embed_w = jax.random.uniform(k5, (N, D), jnp.float32)

    loss, iters = inter_domain_loss_with_iters(source, target, graph,
                                               source_embed_w, target_embed_w)
    loss = jax.block_until_ready(loss)
    if int(iters) >= _MAX_ITERS:
        print('WARNING: Doubly stochastic algorithm did not converge!!')

    ref = _reference_numpy(source, target, graph)
    assert abs(float(loss) - ref) <= 1e-3 * max(1.0, abs(ref)), (float(loss), ref)
    print("KERNEL_OK")
</pallas_src>

<mosaic_0001>
module attributes {stable_mosaic.version = 11 : i64} {
  func.func @_inter_domain_loss_kernel(%arg0: memref<8x32xf32, #tpu.memory_space<vmem>>, %arg1: memref<8x32xf32, #tpu.memory_space<vmem>>, %arg2: memref<8x8xf32, #tpu.memory_space<vmem>>, %arg3: memref<1x1xf32, #tpu.memory_space<smem>>, %arg4: memref<1x1xi32, #tpu.memory_space<smem>>) attributes {dimension_semantics = [], scalar_prefetch = 0 : i64, scratch_operands = 0 : i64, tpu.core_type = #tpu.core_type<tc>} {
    %c0 = arith.constant 0 : index
    %c0_0 = arith.constant 0 : index
    %0 = vector.load %arg2[%c0, %c0_0] : memref<8x8xf32, #tpu.memory_space<vmem>>, vector<8x8xf32>
    %cst = arith.constant 9.99999974E-6 : f32
    %1 = vector.broadcast %cst : f32 to vector<8x8xf32>
    %2 = arith.addf %0, %1 : vector<8x8xf32>
    %cst_1 = arith.constant dense<0.000000e+00> : vector<8xf32>
    %3 = vector.multi_reduction <add>, %2, %cst_1 [0] : vector<8x8xf32> to vector<8xf32>
    %4 = vector.shape_cast %3 : vector<8xf32> to vector<1x8xf32>
    %cst_2 = arith.constant 1.000000e+00 : f32
    %c0_i32 = arith.constant 0 : i32
    %5:4 = scf.while (%arg5 = %2, %arg6 = %4, %arg7 = %cst_2, %arg8 = %c0_i32) : (vector<8x8xf32>, vector<1x8xf32>, f32, i32) -> (vector<8x8xf32>, vector<1x8xf32>, f32, i32) {
      %cst_19 = arith.constant 9.99999974E-6 : f32
      %32 = arith.cmpf ogt, %arg7, %cst_19 : f32
      %c10000_i32 = arith.constant 10000 : i32
      %33 = arith.cmpi slt, %arg8, %c10000_i32 : i32
      %34 = arith.andi %32, %33 : i1
      scf.condition(%34) %arg5, %arg6, %arg7, %arg8 : vector<8x8xf32>, vector<1x8xf32>, f32, i32
    } do {
    ^bb0(%arg5: vector<8x8xf32>, %arg6: vector<1x8xf32>, %arg7: f32, %arg8: i32):
      %32 = tpu.reciprocal %arg6 {approx = true} : vector<1x8xf32> -> vector<1x8xf32>
      %33 = vector.broadcast %32 : vector<1x8xf32> to vector<8x8xf32>
      %34 = arith.mulf %arg5, %33 : vector<8x8xf32>
      %cst_19 = arith.constant dense<0.000000e+00> : vector<8xf32>
      %35 = vector.multi_reduction <add>, %34, %cst_19 [1] : vector<8x8xf32> to vector<8xf32>
      %36 = vector.shape_cast %35 : vector<8xf32> to vector<8x1xf32>
      %37 = tpu.reciprocal %36 {approx = true} : vector<8x1xf32> -> vector<8x1xf32>
      %38 = vector.broadcast %37 : vector<8x1xf32> to vector<8x8xf32>
      %39 = arith.mulf %34, %38 : vector<8x8xf32>
      %cst_20 = arith.constant dense<0.000000e+00> : vector<8xf32>
      %40 = vector.multi_reduction <add>, %39, %cst_20 [0] : vector<8x8xf32> to vector<8xf32>
      %41 = vector.shape_cast %40 : vector<8xf32> to vector<1x8xf32>
      %42 = tpu.reciprocal %41 {approx = true} : vector<1x8xf32> -> vector<1x8xf32>
      %43 = vector.broadcast %42 : vector<1x8xf32> to vector<8x8xf32>
      %44 = arith.mulf %39, %43 : vector<8x8xf32>
      %cst_21 = arith.constant dense<0.000000e+00> : vector<8xf32>
      %45 = vector.multi_reduction <add>, %44, %cst_21 [1] : vector<8x8xf32> to vector<8xf32>
      %46 = vector.shape_cast %45 : vector<8xf32> to vector<8x1xf32>
      %47 = tpu.reciprocal %46 {approx = true} : vector<8x1xf32> -> vector<8x1xf32>
      %48 = vector.broadcast %47 : vector<8x1xf32> to vector<8x8xf32>
      %49 = arith.mulf %44, %48 : vector<8x8xf32>
      %cst_22 = arith.constant dense<0.000000e+00> : vector<8xf32>
      %50 = vector.multi_reduction <add>, %49, %cst_22 [0] : vector<8x8xf32> to vector<8xf32>
      %51 = vector.shape_cast %50 : vector<8xf32> to vector<1x8xf32>
      %52 = tpu.reciprocal %51 {approx = true} : vector<1x8xf32> -> vector<1x8xf32>
      %53 = vector.broadcast %52 : vector<1x8xf32> to vector<8x8xf32>
      %54 = arith.mulf %49, %53 : vector<8x8xf32>
      %cst_23 = arith.constant dense<0.000000e+00> : vector<8xf32>
      %55 = vector.multi_reduction <add>, %54, %cst_23 [1] : vector<8x8xf32> to vector<8xf32>
      %56 = vector.shape_cast %55 : vector<8xf32> to vector<8x1xf32>
      %57 = tpu.reciprocal %56 {approx = true} : vector<8x1xf32> -> vector<8x1xf32>
      %58 = vector.broadcast %57 : vector<8x1xf32> to vector<8x8xf32>
      %59 = arith.mulf %54, %58 : vector<8x8xf32>
      %cst_24 = arith.constant dense<0.000000e+00> : vector<8xf32>
      %60 = vector.multi_reduction <add>, %59, %cst_24 [0] : vector<8x8xf32> to vector<8xf32>
      %61 = vector.shape_cast %60 : vector<8xf32> to vector<1x8xf32>
      %62 = tpu.reciprocal %61 {approx = true} : vector<1x8xf32> -> vector<1x8xf32>
      %63 = vector.broadcast %62 : vector<1x8xf32> to vector<8x8xf32>
      %64 = arith.mulf %59, %63 : vector<8x8xf32>
      %cst_25 = arith.constant dense<0.000000e+00> : vector<8xf32>
      %65 = vector.multi_reduction <add>, %64, %cst_25 [1] : vector<8x8xf32> to vector<8xf32>
      %66 = vector.shape_cast %65 : vector<8xf32> to vector<8x1xf32>
      %67 = tpu.reciprocal %66 {approx = true} : vector<8x1xf32> -> vector<8x1xf32>
      %68 = vector.broadcast %67 : vector<8x1xf32> to vector<8x8xf32>
      %69 = arith.mulf %64, %68 : vector<8x8xf32>
      %cst_26 = arith.constant dense<0.000000e+00> : vector<8xf32>
      %70 = vector.multi_reduction <add>, %69, %cst_26 [0] : vector<8x8xf32> to vector<8xf32>
      %71 = vector.shape_cast %70 : vector<8xf32> to vector<1x8xf32>
      %72 = tpu.reciprocal %71 {approx = true} : vector<1x8xf32> -> vector<1x8xf32>
      %73 = vector.broadcast %72 : vector<1x8xf32> to vector<8x8xf32>
      %74 = arith.mulf %69, %73 : vector<8x8xf32>
      %cst_27 = arith.constant dense<0.000000e+00> : vector<8xf32>
      %75 = vector.multi_reduction <add>, %74, %cst_27 [1] : vector<8x8xf32> to vector<8xf32>
      %76 = vector.shape_cast %75 : vector<8xf32> to vector<8x1xf32>
      %77 = tpu.reciprocal %76 {approx = true} : vector<8x1xf32> -> vector<8x1xf32>
      %78 = vector.broadcast %77 : vector<8x1xf32> to vector<8x8xf32>
      %79 = arith.mulf %74, %78 : vector<8x8xf32>
      %cst_28 = arith.constant dense<0.000000e+00> : vector<8xf32>
      %80 = vector.multi_reduction <add>, %79, %cst_28 [0] : vector<8x8xf32> to vector<8xf32>
      %81 = vector.shape_cast %80 : vector<8xf32> to vector<1x8xf32>
      %82 = tpu.reciprocal %81 {approx = true} : vector<1x8xf32> -> vector<1x8xf32>
      %83 = vector.broadcast %82 : vector<1x8xf32> to vector<8x8xf32>
      %84 = arith.mulf %79, %83 : vector<8x8xf32>
      %cst_29 = arith.constant dense<0.000000e+00> : vector<8xf32>
      %85 = vector.multi_reduction <add>, %84, %cst_29 [1] : vector<8x8xf32> to vector<8xf32>
      %86 = vector.shape_cast %85 : vector<8xf32> to vector<8x1xf32>
      %87 = tpu.reciprocal %86 {approx = true} : vector<8x1xf32> -> vector<8x1xf32>
      %88 = vector.broadcast %87 : vector<8x1xf32> to vector<8x8xf32>
      %89 = arith.mulf %84, %88 : vector<8x8xf32>
      %cst_30 = arith.constant dense<0.000000e+00> : vector<8xf32>
      %90 = vector.multi_reduction <add>, %89, %cst_30 [0] : vector<8x8xf32> to vector<8xf32>
      %91 = vector.shape_cast %90 : vector<8xf32> to vector<1x8xf32>
      %92 = tpu.reciprocal %91 {approx = true} : vector<1x8xf32> -> vector<1x8xf32>
      %93 = vector.broadcast %92 : vector<1x8xf32> to vector<8x8xf32>
      %94 = arith.mulf %89, %93 : vector<8x8xf32>
      %cst_31 = arith.constant dense<0.000000e+00> : vector<8xf32>
      %95 = vector.multi_reduction <add>, %94, %cst_31 [1] : vector<8x8xf32> to vector<8xf32>
      %96 = vector.shape_cast %95 : vector<8xf32> to vector<8x1xf32>
      %97 = tpu.reciprocal %96 {approx = true} : vector<8x1xf32> -> vector<8x1xf32>
      %98 = vector.broadcast %97 : vector<8x1xf32> to vector<8x8xf32>
      %99 = arith.mulf %94, %98 : vector<8x8xf32>
      %cst_32 = arith.constant dense<0.000000e+00> : vector<8xf32>
      %100 = vector.multi_reduction <add>, %99, %cst_32 [0] : vector<8x8xf32> to vector<8xf32>
      %101 = vector.shape_cast %100 : vector<8xf32> to vector<1x8xf32>
      %102 = vector.broadcast %101 : vector<1x8xf32> to vector<8x8xf32>
      %103 = arith.divf %99, %102 : vector<8x8xf32>
      %cst_33 = arith.constant dense<0.000000e+00> : vector<8xf32>
      %104 = vector.multi_reduction <add>, %103, %cst_33 [1] : vector<8x8xf32> to vector<8xf32>
      %105 = vector.shape_cast %104 : vector<8xf32> to vector<8x1xf32>
      %106 = vector.broadcast %105 : vector<8x1xf32> to vector<8x8xf32>
      %107 = arith.divf %103, %106 : vector<8x8xf32>
      %cst_34 = arith.constant dense<0.000000e+00> : vector<8xf32>
      %108 = vector.multi_reduction <add>, %107, %cst_34 [0] : vector<8x8xf32> to vector<8xf32>
      %109 = vector.shape_cast %108 : vector<8xf32> to vector<1x8xf32>
      %cst_35 = arith.constant 1.000000e+00 : f32
      %110 = vector.broadcast %cst_35 : f32 to vector<1x8xf32>
      %111 = arith.subf %109, %110 : vector<1x8xf32>
      %112 = math.absf %111 : vector<1x8xf32>
      %113 = vector.shape_cast %112 : vector<1x8xf32> to vector<1x1x8xf32>
      %cst_36 = arith.constant dense<0xFF800000> : vector<1xf32>
      %114 = vector.multi_reduction <maximumf>, %113, %cst_36 [1, 2] : vector<1x1x8xf32> to vector<1xf32>
      %115 = vector.shape_cast %114 : vector<1xf32> to vector<1x1x1xf32>
      %116 = vector.extract %115[0, 0, 0] : f32 from vector<1x1x1xf32>
      %c8_i32 = arith.constant 8 : i32
      %117 = arith.addi %arg8, %c8_i32 : i32
      scf.yield %107, %109, %116, %117 : vector<8x8xf32>, vector<1x8xf32>, f32, i32
    }
    %c0_3 = arith.constant 0 : index
    %c0_4 = arith.constant 0 : index
    %6 = memref.load %arg4[%c0_3, %c0_4] : memref<1x1xi32, #tpu.memory_space<smem>>
    memref.store %5#3, %arg4[%c0_3, %c0_4] : memref<1x1xi32, #tpu.memory_space<smem>>
    %c0_5 = arith.constant 0 : index
    %c0_6 = arith.constant 0 : index
    %7 = vector.load %arg0[%c0_5, %c0_6] : memref<8x32xf32, #tpu.memory_space<vmem>>, vector<8x32xf32>
    %c0_7 = arith.constant 0 : index
    %c0_8 = arith.constant 0 : index
    %8 = vector.load %arg1[%c0_7, %c0_8] : memref<8x32xf32, #tpu.memory_space<vmem>>, vector<8x32xf32>
    %cst_9 = arith.constant dense<0.000000e+00> : vector<8x8xf32>
    %9 = tpu.matmul %8, %7, %cst_9 {dimension_numbers = #tpu.dot_dimension_numbers<[1], [1], [0], [0], [0, 0, 1, 0], [], []>} : vector<8x32xf32>, vector<8x32xf32>, vector<8x8xf32> -> vector<8x8xf32>
    %10 = arith.mulf %8, %8 : vector<8x32xf32>
    %cst_10 = arith.constant dense<0.000000e+00> : vector<8xf32>
    %11 = vector.multi_reduction <add>, %10, %cst_10 [1] : vector<8x32xf32> to vector<8xf32>
    %12 = vector.shape_cast %11 : vector<8xf32> to vector<8x1xf32>
    %13 = arith.mulf %7, %7 : vector<8x32xf32>
    %cst_11 = arith.constant dense<0.000000e+00> : vector<8xf32>
    %14 = vector.multi_reduction <add>, %13, %cst_11 [1] : vector<8x32xf32> to vector<8xf32>
    %15 = vector.shape_cast %14 : vector<8xf32> to vector<8x1xf32>
    %cst_12 = arith.constant 1.000000e+00 : f32
    %16 = vector.broadcast %cst_12 : f32 to vector<8x1xf32>
    %cst_13 = arith.constant dense<0.000000e+00> : vector<8x8xf32>
    %17 = tpu.matmul %16, %15, %cst_13 {dimension_numbers = #tpu.dot_dimension_numbers<[1], [1], [0], [0], [0, 0, 1, 0], [], []>} : vector<8x1xf32>, vector<8x1xf32>, vector<8x8xf32> -> vector<8x8xf32>
    %18 = vector.broadcast %12 : vector<8x1xf32> to vector<8x8xf32>
    %19 = arith.addf %18, %17 : vector<8x8xf32>
    %cst_14 = arith.constant 2.000000e+00 : f32
    %20 = vector.broadcast %cst_14 : f32 to vector<8x8xf32>
    %21 = arith.mulf %20, %9 : vector<8x8xf32>
    %22 = arith.subf %19, %21 : vector<8x8xf32>
    %cst_15 = arith.constant 0.000000e+00 : f32
    %23 = vector.broadcast %cst_15 : f32 to vector<8x8xf32>
    %24 = arith.maximumf %22, %23 : vector<8x8xf32>
    %25 = math.sqrt %24 : vector<8x8xf32>
    %26 = arith.mulf %25, %5#0 : vector<8x8xf32>
    %27 = vector.shape_cast %26 : vector<8x8xf32> to vector<1x8x8xf32>
    %cst_16 = arith.constant dense<0.000000e+00> : vector<1xf32>
    %28 = vector.multi_reduction <add>, %27, %cst_16 [1, 2] : vector<1x8x8xf32> to vector<1xf32>
    %29 = vector.shape_cast %28 : vector<1xf32> to vector<1x1x1xf32>
    %30 = vector.extract %29[0, 0, 0] : f32 from vector<1x1x1xf32>
    %c0_17 = arith.constant 0 : index
    %c0_18 = arith.constant 0 : index
    %31 = memref.load %arg3[%c0_17, %c0_18] : memref<1x1xf32, #tpu.memory_space<smem>>
    memref.store %30, %arg3[%c0_17, %c0_18] : memref<1x1xf32, #tpu.memory_space<smem>>
    return
  }
}

</mosaic_0001>

<llo_original>
// kernel: tpu_custom_call.1
$region0: #{tpu_custom_call.1}
  #allocation0 [shape = 'u32[]', space=smem, size = 0x4, offset = 0x4, fixed_abs, tag = 'smem constant byte address 0x4 - core index']
  #allocation1 [shape = 'u32[144,128]{1,0:T(1,128)}', space=vmem, size = 0x12000, scoped, tag = 'internal scratch']
  %s0 = inlined_call_operand.hbm [shape: f32[8,32], index: 0, kind: input, shape index: {}]
  %s1 = inlined_call_operand.hbm [shape: f32[8,32], index: 1, kind: input, shape index: {}]
  %s2 = inlined_call_operand.hbm [shape: f32[8,8], index: 2, kind: input, shape index: {}]
  %s3 = inlined_call_operand.hbm [shape: f32[1,1], index: 3, kind: output, shape index: {0}]
  %s4 = inlined_call_operand.hbm [shape: s32[1,1], index: 4, kind: output, shape index: {1}]
  %5 = xla_tuple %s3, %s4
  %s6 = sld [smem:[#allocation0]]
  $region49: #{tpu_custom_call.1} parent=0
    _
  %s8 = ssub.s32 1, %s6
  %s9 = scalar_select 0, %s8, %s6
  $region1: #{tpu_custom_call.1} parent=0
    #allocation2 [shape = 'u8[4096]{0}', space=vmem, size = 0x1000, scoped, tag = 'input window, operand 0, single buffered']
    #allocation3 [shape = 's32[1]{0}', space=sflag, size = 0x4, scoped, tag = 'scoped memory for tpu_custom_call.1']
    #allocation4 [shape = 's32[1]{0}', space=sflag, size = 0x4, scoped, tag = 'scoped memory for tpu_custom_call.1']
    #allocation5 [shape = 'u8[4096]{0}', space=vmem, size = 0x1000, scoped, tag = 'input window, operand 1, single buffered']
    #allocation6 [shape = 's32[1]{0}', space=sflag, size = 0x4, scoped, tag = 'scoped memory for tpu_custom_call.1']
    #allocation7 [shape = 'u8[4096]{0}', space=vmem, size = 0x1000, scoped, tag = 'input window, operand 2, single buffered']
    #allocation8 [shape = 'u8[512]{0}', space=smem, size = 0x200, scoped, tag = 'output window, operand 0, single buffered']
    #allocation9 [shape = 'u8[512]{0}', space=smem, size = 0x200, scoped, tag = 'output window, operand 1, single buffered']
    #allocation10 [shape = 's32[1]{0}', space=sflag, size = 0x4, scoped, tag = 'scoped memory for tpu_custom_call.1']
    %10 = vsyncpa [#allocation3], 0
    %11 = vsyncpa [#allocation6], 0
    %12 = vsyncpa [#allocation4], 0
    %13 = vsyncpa [#allocation10], 0
    // Predicated region
    $region2: #{tpu_custom_call.1} parent=1 // pred_check
      _
    $region3: #{tpu_custom_call.1} parent=1 // pred_check_branch
      %15 = sbr.rel (0) target = $region5
    $region4: #{tpu_custom_call.1} parent=1 // pred_region
      %s17 = ssub.s32 128, 128
      %18 = vsyncadd [#allocation3], %s17
      %s20 = sshll.u32 [#allocation2], 4
      %s21 = int_to_ptr.vmem [resolvable:$true] %s20
      %23 = dma.hbm_to_vmem [thread:$0]  %s0, 128, %s21, [#allocation3]
    $region5: #{tpu_custom_call.1} parent=1 // pred_fallthru
      _
    // Predicated region
    $region6: #{tpu_custom_call.1} parent=1 // pred_check
      _
    $region7: #{tpu_custom_call.1} parent=1 // pred_check_branch
      %25 = sbr.rel (0) target = $region9
    $region8: #{tpu_custom_call.1} parent=1 // pred_region
      %s27 = ssub.s32 128, 128
      %28 = vsyncadd [#allocation6], %s27
      %s30 = sshll.u32 [#allocation5], 4
      %s31 = int_to_ptr.vmem [resolvable:$true] %s30
      %33 = dma.hbm_to_vmem [thread:$0]  %s1, 128, %s31, [#allocation6]
    $region9: #{tpu_custom_call.1} parent=1 // pred_fallthru
      _
    // Predicated region
    $region10: #{tpu_custom_call.1} parent=1 // pred_check
      _
    $region11: #{tpu_custom_call.1} parent=1 // pred_check_branch
      %35 = sbr.rel (0) target = $region13
    $region12: #{tpu_custom_call.1} parent=1 // pred_region
      %s37 = ssub.s32 128, 128
      %38 = vsyncadd [#allocation6], %s37
      %s40 = sshll.u32 [#allocation7], 4
      %s41 = int_to_ptr.vmem [resolvable:$true] %s40
      %43 = dma.hbm_to_vmem [thread:$0]  %s2, 128, %s41, [#allocation6]
    $region13: #{tpu_custom_call.1} parent=1 // pred_fallthru
      _
    // Predicated region
    $region14: #{tpu_custom_call.1} parent=1 // pred_check
      _
    $region15: #{tpu_custom_call.1} parent=1 // pred_check_branch
      %45 = sbr.rel (0) target = $region17
    $region16: #{tpu_custom_call.1} parent=1 // pred_region
      %46 = dma.done [#allocation3], 128
    $region17: #{tpu_custom_call.1} parent=1 // pred_fallthru
      _
    // Predicated region
    $region18: #{tpu_custom_call.1} parent=1 // pred_check
      _
    $region19: #{tpu_custom_call.1} parent=1 // pred_check_branch
      %48 = sbr.rel (0) target = $region21
    $region20: #{tpu_custom_call.1} parent=1 // pred_region
      %49 = dma.done [#allocation6], 128
    $region21: #{tpu_custom_call.1} parent=1 // pred_fallthru
      _
    // Predicated region
    $region22: #{tpu_custom_call.1} parent=1 // pred_check
      _
    $region23: #{tpu_custom_call.1} parent=1 // pred_check_branch
      %51 = sbr.rel (0) target = $region25
    $region24: #{tpu_custom_call.1} parent=1 // pred_region
      %52 = dma.done [#allocation6], 128
    $region25: #{tpu_custom_call.1} parent=1 // pred_fallthru
      _
    %v53 = vld [vmem:[#allocation7] sm:$0xff]
    %v54 = vadd.f32 %v53, 1e-05
    %vm55 = vcmask 64512
    %v56 = vsel %vm55, %v54, 0.0
    %v57 = vrot.slane %v56, 4
    %v58 = vadd.f32 %v56, %v57
    %v59 = vrot.slane %v58, 2
    %v60 = vadd.f32 %v58, %v59
    %v61 = vrot.slane %v60, 1
    %v62 = vadd.f32 %v60, %v61
    // While loop
    $region26: #{tpu_custom_call.1} parent=1 // loop_pre_header
      _
    $region27: #{tpu_custom_call.1} parent=1 // loop_header
      %v64 = vphi %v54, %v178
      %v65 = vphi %v62, %v185
      %s66 = sphi 1.0, %s191
      %s67 = sphi 0, %s192
      %p68 = scmp.gt.f32.partialorder %s66, 1e-05
      %p69 = scmp.lt.s32.totalorder %s67, 10000
      %p70 = pnand %p68, %p69
      %p71 = pneg %p70
    $region28: #{tpu_custom_call.1} parent=1 // loop_header_branch
      %73 = sbr.rel (%p70) target = $region32
    $region29: #{tpu_custom_call.1} parent=1 // loop_body
      %v74 = vrcp.pop %v65
      %v75 = vmul.f32 %v64, %v74
      %v76 = vsel %vm55, %v75, 0.0
      %77 = vadd.xlane.f32.xlu0 %v76
      %v78 = vpop.xlane.xlu0 %77
      %v79 = vrcp.pop %v78
      %v80 = vmul.f32 %v75, %v79
      %v81 = vsel %vm55, %v80, 0.0
      %v82 = vrot.slane %v81, 4
      %v83 = vadd.f32 %v81, %v82
      %v84 = vrot.slane %v83, 2
      %v85 = vadd.f32 %v83, %v84
      %v86 = vrot.slane %v85, 1
      %v87 = vadd.f32 %v85, %v86
      %v88 = vrcp.pop %v87
      %v89 = vmul.f32 %v80, %v88
      %v90 = vsel %vm55, %v89, 0.0
      %91 = vadd.xlane.f32.xlu0 %v90
      %v92 = vpop.xlane.xlu0 %91
      %v93 = vrcp.pop %v92
      %v94 = vmul.f32 %v89, %v93
      %v95 = vsel %vm55, %v94, 0.0
      %v96 = vrot.slane %v95, 4
      %v97 = vadd.f32 %v95, %v96
      %v98 = vrot.slane %v97, 2
      %v99 = vadd.f32 %v97, %v98
      %v100 = vrot.slane %v99, 1
      %v101 = vadd.f32 %v99, %v100
      %v102 = vrcp.pop %v101
      %v103 = vmul.f32 %v94, %v102
      %v104 = vsel %vm55, %v103, 0.0
      %105 = vadd.xlane.f32.xlu0 %v104
      %v106 = vpop.xlane.xlu0 %105
      %v107 = vrcp.pop %v106
      %v108 = vmul.f32 %v103, %v107
      %v109 = vsel %vm55, %v108, 0.0
      %v110 = vrot.slane %v109, 4
      %v111 = vadd.f32 %v109, %v110
      %v112 = vrot.slane %v111, 2
      %v113 = vadd.f32 %v111, %v112
      %v114 = vrot.slane %v113, 1
      %v115 = vadd.f32 %v113, %v114
      %v116 = vrcp.pop %v115
      %v117 = vmul.f32 %v108, %v116
      %v118 = vsel %vm55, %v117, 0.0
      %119 = vadd.xlane.f32.xlu0 %v118
      %v120 = vpop.xlane.xlu0 %119
      %v121 = vrcp.pop %v120
      %v122 = vmul.f32 %v117, %v121
      %v123 = vsel %vm55, %v122, 0.0
      %v124 = vrot.slane %v123, 4
      %v125 = vadd.f32 %v123, %v124
      %v126 = vrot.slane %v125, 2
      %v127 = vadd.f32 %v125, %v126
      %v128 = vrot.slane %v127, 1
      %v129 = vadd.f32 %v127, %v128
      %v130 = vrcp.pop %v129
      %v131 = vmul.f32 %v122, %v130
      %v132 = vsel %vm55, %v131, 0.0
      %133 = vadd.xlane.f32.xlu0 %v132
      %v134 = vpop.xlane.xlu0 %133
      %v135 = vrcp.pop %v134
      %v136 = vmul.f32 %v131, %v135
      %v137 = vsel %vm55, %v136, 0.0
      %v138 = vrot.slane %v137, 4
      %v139 = vadd.f32 %v137, %v138
      %v140 = vrot.slane %v139, 2
      %v141 = vadd.f32 %v139, %v140
      %v142 = vrot.slane %v141, 1
      %v143 = vadd.f32 %v141, %v142
      %v144 = vrcp.pop %v143
      %v145 = vmul.f32 %v136, %v144
      %v146 = vsel %vm55, %v145, 0.0
      %147 = vadd.xlane.f32.xlu0 %v146
      %v148 = vpop.xlane.xlu0 %147
      %v149 = vrcp.pop %v148
      %v150 = vmul.f32 %v145, %v149
      %v151 = vsel %vm55, %v150, 0.0
      %v152 = vrot.slane %v151, 4
      %v153 = vadd.f32 %v151, %v152
      %v154 = vrot.slane %v153, 2
      %v155 = vadd.f32 %v153, %v154
      %v156 = vrot.slane %v155, 1
      %v157 = vadd.f32 %v155, %v156
      %v158 = vrcp.pop %v157
      %v159 = vmul.f32 %v150, %v158
      %v160 = vsel %vm55, %v159, 0.0
      %161 = vadd.xlane.f32.xlu0 %v160
      %v162 = vpop.xlane.xlu0 %161
      %v163 = vrcp.pop %v162
      %v164 = vmul.f32 %v159, %v163
      %v165 = vsel %vm55, %v164, 0.0
      %v166 = vrot.slane %v165, 4
      %v167 = vadd.f32 %v165, %v166
      %v168 = vrot.slane %v167, 2
      %v169 = vadd.f32 %v167, %v168
      %v170 = vrot.slane %v169, 1
      %v171 = vadd.f32 %v169, %v170
      %v172 = vrcp.pop %v171
      %v173 = vmul.f32 %v164, %v172
      %v174 = vsel %vm55, %v173, 0.0
      %175 = vadd.xlane.f32.xlu0 %v174
      %v176 = vpop.xlane.xlu0 %175
      %v177 = vrcp.pop %v176
      %v178 = vmul.f32 %v173, %v177
      %v179 = vsel %vm55, %v178, 0.0
      %v180 = vrot.slane %v179, 4
      %v181 = vadd.f32 %v179, %v180
      %v182 = vrot.slane %v181, 2
      %v183 = vadd.f32 %v181, %v182
      %v184 = vrot.slane %v183, 1
      %v185 = vadd.f32 %v183, %v184
      %v186 = vsub.f32 %v185, 1.0
      %v187 = vand.u32 2147483647, %v186
      %v188 = vsel %vm55, %v187, -inf
      %189 = vmax.xlane.f32.xlu0 %v188
      %v190 = vpop.xlane.xlu0 %189
      %s191 = vtos %v190
      %s192 = sadd.s32 %s67, 8
    $region30: #{tpu_custom_call.1} parent=1 // loop_footer
      _
    $region31: #{tpu_custom_call.1} parent=1 // loop_footer_branch
      %63 = sbr.rel target = $region27
    $region32: #{tpu_custom_call.1} parent=1 // loop_exit
      _
    %s193 = scalar_lea.smem [#allocation9], 0
    %194 = sst [smem:[%s193]] %s67
    %v195 = vld [vmem:[#allocation2] sm:$0xff]
    %v196 = vld [vmem:[#allocation5] sm:$0xff]
    %vm197 = vcmask 261120
    %v199 = vsel %vm197, %v196, 0
    %v202 = vsel %vm197, %v195, 0
    %204 = vmatprep.subr.mxu0 0.0
    %205 = vmatpush1.xpose.msra.mxu0 %v202
    %206 = vmatprep.subr.mxu0 0.0
    %207 = vmatpush1.xpose.msra.mxu0 0.0
    %208 = vmatprep.subr.mxu0 0.0
    %209 = vmatpush1.xpose.msra.mxu0 0.0
    %210 = vmatprep.subr.mxu0 0.0
    %211 = vmatpush1.xpose.msra.mxu0 0.0
    %212 = vmatprep.subr.mxu0 0.0
    %213 = vmatpush1.xpose.msra.mxu0 0.0
    %214 = vmatprep.subr.mxu0 0.0
    %215 = vmatpush1.xpose.msra.mxu0 0.0
    %216 = vmatprep.subr.mxu0 0.0
    %217 = vmatpush1.xpose.msra.mxu0 0.0
    %218 = vmatprep.subr.mxu0 0.0
    %219 = vmatpush1.xpose.msra.mxu0 0.0
    %220 = vmatprep.subr.mxu0 0.0
    %221 = vmatpush1.xpose.msra.mxu0 0.0
    %222 = vmatprep.subr.mxu0 0.0
    %223 = vmatpush1.xpose.msra.mxu0 0.0
    %224 = vmatprep.subr.mxu0 0.0
    %225 = vmatpush1.xpose.msra.mxu0 0.0
    %226 = vmatprep.subr.mxu0 0.0
    %227 = vmatpush1.xpose.msra.mxu0 0.0
    %228 = vmatprep.subr.mxu0 0.0
    %229 = vmatpush1.xpose.msra.mxu0 0.0
    %230 = vmatprep.subr.mxu0 0.0
    %231 = vmatpush1.xpose.msra.mxu0 0.0
    %232 = vmatprep.subr.mxu0 0.0
    %233 = vmatpush1.xpose.msra.mxu0 0.0
    %234 = vmatprep.subr.mxu0 0.0
    %235 = vmatpush1.xpose.msra.mxu0 0.0
    %236 = vmatprep.subr.mxu0 0.0
    %237 = vmatpush1.xpose.msra.mxu0 0.0
    %238 = vmatprep.subr.mxu0 0.0
    %239 = vmatpush1.xpose.msra.mxu0 0.0
    %240 = vmatprep.subr.mxu0 0.0
    %241 = vmatpush1.xpose.msra.mxu0 0.0
    %242 = vmatprep.subr.mxu0 0.0
    %243 = vmatpush1.xpose.msra.mxu0 0.0
    %244 = vmatprep.subr.mxu0 0.0
    %245 = vmatpush1.xpose.msra.mxu0 0.0
    %246 = vmatprep.subr.mxu0 0.0
    %247 = vmatpush1.xpose.msra.mxu0 0.0
    %248 = vmatprep.subr.mxu0 0.0
    %249 = vmatpush1.xpose.msra.mxu0 0.0
    %250 = vmatprep.subr.mxu0 0.0
    %251 = vmatpush1.xpose.msra.mxu0 0.0
    %252 = vmatprep.subr.mxu0 0.0
    %253 = vmatpush1.xpose.msra.mxu0 0.0
    %254 = vmatprep.subr.mxu0 0.0
    %255 = vmatpush1.xpose.msra.mxu0 0.0
    %256 = vmatprep.subr.mxu0 0.0
    %257 = vmatpush1.xpose.msra.mxu0 0.0
    %258 = vmatprep.subr.mxu0 0.0
    %259 = vmatpush1.xpose.msra.mxu0 0.0
    %260 = vmatprep.subr.mxu0 0.0
    %261 = vmatpush1.xpose.msra.mxu0 0.0
    %262 = vmatprep.subr.mxu0 0.0
    %263 = vmatpush1.xpose.msra.mxu0 0.0
    %264 = vmatprep.subr.mxu0 0.0
    %265 = vmatpush1.xpose.msra.mxu0 0.0
    %266 = vmatprep.subr.mxu0 0.0
    %267 = vmatpush1.xpose.msra.mxu0 0.0
    %268 = vmatprep.mubr.f32.mxu0 0.0
    %269 = vmatmul.mubr.f32.gmra.mrb[0].mxu0 %v199
    %v270 = vpop.f32.mrb[0].mxu0
    %v271 = vadd.f32 0.0, %v270
    %v272 = vpop.f32.mrb[0].mxu0
    %273 = vdwg.mxu0
    %v274 = vmul.f32 %v196, %v196
    %v275 = vsel %vm197, %v274, 0.0
    %276 = vadd.xlane.f32.xlu0 %v275
    %v277 = vpop.xlane.xlu0 %276
    %v278 = vmul.f32 %v195, %v195
    %v279 = vsel %vm197, %v278, 0.0
    %280 = vadd.xlane.f32.xlu0 %v279
    %v281 = vpop.xlane.xlu0 %280
    %vm282 = vcmask 7168
    %v284 = vsel %vm282, 1.0, 0
    %v287 = vsel %vm282, %v281, 0
    %289 = vmatprep.subr.mxu0 0.0
    %290 = vmatpush1.xpose.msra.mxu0 %v287
    %291 = vmatprep.subr.mxu0 0.0
    %292 = vmatpush1.xpose.msra.mxu0 0.0
    %293 = vmatprep.subr.mxu0 0.0
    %294 = vmatpush1.xpose.msra.mxu0 0.0
    %295 = vmatprep.subr.mxu0 0.0
    %296 = vmatpush1.xpose.msra.mxu0 0.0
    %297 = vmatprep.subr.mxu0 0.0
    %298 = vmatpush1.xpose.msra.mxu0 0.0
    %299 = vmatprep.subr.mxu0 0.0
    %300 = vmatpush1.xpose.msra.mxu0 0.0
    %301 = vmatprep.subr.mxu0 0.0
    %302 = vmatpush1.xpose.msra.mxu0 0.0
    %303 = vmatprep.subr.mxu0 0.0
    %304 = vmatpush1.xpose.msra.mxu0 0.0
    %305 = vmatprep.subr.mxu0 0.0
    %306 = vmatpush1.xpose.msra.mxu0 0.0
    %307 = vmatprep.subr.mxu0 0.0
    %308 = vmatpush1.xpose.msra.mxu0 0.0
    %309 = vmatprep.subr.mxu0 0.0
    %310 = vmatpush1.xpose.msra.mxu0 0.0
    %311 = vmatprep.subr.mxu0 0.0
    %312 = vmatpush1.xpose.msra.mxu0 0.0
    %313 = vmatprep.subr.mxu0 0.0
    %314 = vmatpush1.xpose.msra.mxu0 0.0
    %315 = vmatprep.subr.mxu0 0.0
    %316 = vmatpush1.xpose.msra.mxu0 0.0
    %317 = vmatprep.subr.mxu0 0.0
    %318 = vmatpush1.xpose.msra.mxu0 0.0
    %319 = vmatprep.subr.mxu0 0.0
    %320 = vmatpush1.xpose.msra.mxu0 0.0
    %321 = vmatprep.subr.mxu0 0.0
    %322 = vmatpush1.xpose.msra.mxu0 0.0
    %323 = vmatprep.subr.mxu0 0.0
    %324 = vmatpush1.xpose.msra.mxu0 0.0
    %325 = vmatprep.subr.mxu0 0.0
    %326 = vmatpush1.xpose.msra.mxu0 0.0
    %327 = vmatprep.subr.mxu0 0.0
    %328 = vmatpush1.xpose.msra.mxu0 0.0
    %329 = vmatprep.subr.mxu0 0.0
    %330 = vmatpush1.xpose.msra.mxu0 0.0
    %331 = vmatprep.subr.mxu0 0.0
    %332 = vmatpush1.xpose.msra.mxu0 0.0
    %333 = vmatprep.subr.mxu0 0.0
    %334 = vmatpush1.xpose.msra.mxu0 0.0
    %335 = vmatprep.subr.mxu0 0.0
    %336 = vmatpush1.xpose.msra.mxu0 0.0
    %337 = vmatprep.subr.mxu0 0.0
    %338 = vmatpush1.xpose.msra.mxu0 0.0
    %339 = vmatprep.subr.mxu0 0.0
    %340 = vmatpush1.xpose.msra.mxu0 0.0
    %341 = vmatprep.subr.mxu0 0.0
    %342 = vmatpush1.xpose.msra.mxu0 0.0
    %343 = vmatprep.subr.mxu0 0.0
    %344 = vmatpush1.xpose.msra.mxu0 0.0
    %345 = vmatprep.subr.mxu0 0.0
    %346 = vmatpush1.xpose.msra.mxu0 0.0
    %347 = vmatprep.subr.mxu0 0.0
    %348 = vmatpush1.xpose.msra.mxu0 0.0
    %349 = vmatprep.subr.mxu0 0.0
    %350 = vmatpush1.xpose.msra.mxu0 0.0
    %351 = vmatprep.subr.mxu0 0.0
    %352 = vmatpush1.xpose.msra.mxu0 0.0
    %353 = vmatprep.mubr.f32.mxu0 0.0
    %354 = vmatmul.mubr.f32.gmra.mrb[0].mxu0 %v284
    %v355 = vpop.f32.mrb[0].mxu0
    %v356 = vadd.f32 0.0, %v355
    %v357 = vpop.f32.mrb[0].mxu0
    %358 = vdwg.mxu0
    %v359 = vadd.f32 %v277, %v356
    %v360 = vmul.f32 %v271, 2.0
    %v361 = vsub.f32 %v359, %v360
    %v362 = vmax.f32 %v361, 0.0
    %v363 = vrsqrt.pop %v362
    %v364 = vmul.f32 %v362, %v363
    %vm365 = vcmp.eq.f32.partialorder %v362, inf
    %v366 = vsel %vm365, %v362, %v364
    %vm367 = vcmp.eq.f32.partialorder %v362, 0.0
    %v368 = vand.u32 %v362, 2147483648
    %v369 = vsel %vm367, %v368, %v366
    %v370 = vmul.f32 %v369, %v64
    %v371 = vsel %vm55, %v370, 0.0
    %372 = vadd.xlane.f32.xlu0 %v371
    %v373 = vpop.xlane.xlu0 %372
    %v374 = vrot.slane %v373, 4
    %v375 = vadd.f32 %v373, %v374
    %v376 = vrot.slane %v375, 2
    %v377 = vadd.f32 %v375, %v376
    %v378 = vrot.slane %v377, 1
    %v379 = vadd.f32 %v377, %v378
    %s380 = vtos %v379
    %s381 = scalar_lea.smem [#allocation8], 0
    %382 = sst [smem:[%s381]] %s380
    // Predicated region
    $region33: #{tpu_custom_call.1} parent=1 // pred_check
      _
    $region34: #{tpu_custom_call.1} parent=1 // pred_check_branch
      %384 = sbr.rel (0) target = $region36
    $region35: #{tpu_custom_call.1} parent=1 // pred_region
      %s386 = ssub.s32 16, 16
      %387 = vsyncadd [#allocation4], %s386
      %390 = dma.smem_to_hbm [#allocation8], 16, %s3, [#allocation4]
    $region36: #{tpu_custom_call.1} parent=1 // pred_fallthru
      _
    // Predicated region
    $region37: #{tpu_custom_call.1} parent=1 // pred_check
      _
    $region38: #{tpu_custom_call.1} parent=1 // pred_check_branch
      %392 = sbr.rel (0) target = $region40
    $region39: #{tpu_custom_call.1} parent=1 // pred_region
      %s394 = ssub.s32 16, 16
      %395 = vsyncadd [#allocation10], %s394
      %398 = dma.smem_to_hbm [#allocation9], 16, %s4, [#allocation10]
    $region40: #{tpu_custom_call.1} parent=1 // pred_fallthru
      _
    // Predicated region
    $region41: #{tpu_custom_call.1} parent=1 // pred_check
      _
    $region42: #{tpu_custom_call.1} parent=1 // pred_check_branch
      %400 = sbr.rel (0) target = $region44
    $region43: #{tpu_custom_call.1} parent=1 // pred_region
      %401 = dma.done [#allocation4], 16
    $region44: #{tpu_custom_call.1} parent=1 // pred_fallthru
      _
    // Predicated region
    $region45: #{tpu_custom_call.1} parent=1 // pred_check
      _
    $region46: #{tpu_custom_call.1} parent=1 // pred_check_branch
      %403 = sbr.rel (0) target = $region48
    $region47: #{tpu_custom_call.1} parent=1 // pred_region
      %404 = dma.done [#allocation10], 16
    $region48: #{tpu_custom_call.1} parent=1 // pred_fallthru
      _
    %405 = sfence
    %406 = vsyncpa [#allocation3], 1
    %407 = vsyncpa [#allocation6], 1
    %408 = vsyncpa [#allocation4], 1
    %409 = vsyncpa [#allocation10], 1

</llo_original>
